<compile_context>
chip_gen: v7x
topology: tpu7x:2x2x1
jax: 0.10.0
libtpu: 0.0.40
codegen_flags: <defaults>
</compile_context>

<pallas_src>
import functools

import jax
import jax.numpy as jnp
from jax.experimental import pallas as pl
from jax.experimental.pallas import tpu as pltpu

HIDDEN = 200


def _round_up(x, m):
    return ((x + m - 1) // m) * m


# ---------------------------------------------------------------------------
# Kernel
# ---------------------------------------------------------------------------
def ptmodel_kernel(x_ref,
                   w1_ref, b1_ref, w2_ref, b2_ref, w3_ref, b3_ref,
                   w4_ref, b4_ref,
                   maxlv_ref, evmin_ref, evmax_ref,
                   mean_ref, var_ref):
    def dense(a, w_ref, b_ref):
        w = w_ref[...]
        return jnp.dot(a.astype(w.dtype), w,
                       preferred_element_type=jnp.float32) + b_ref[...]

    def swish(z):
        # sigmoid(z) = 0.5*(tanh(0.5 z) + 1): one EUP op instead of exp+recip
        return z * (0.5 * jnp.tanh(0.5 * z) + 0.5)

    # normalization already folded into fc1 weights/bias
    h = swish(dense(x_ref[...], w1_ref, b1_ref))
    h = swish(dense(h, w2_ref, b2_ref))
    h = swish(dense(h, w3_ref, b3_ref))

    # merged fc4: columns [0:128) = mean head, [128:256) = logvar head
    out = dense(h, w4_ref, b4_ref)
    half_p = maxlv_ref.shape[-1]
    mean = out[:, :half_p]
    z = out[:, half_p:]

    # Fused, algebraically exact form of:
    #   lv = max - softplus(max - z); lv = min + softplus(lv - min); var = exp(lv)
    # = exp(min) + exp(max) * sigmoid(z - max)
    sig = 0.5 * jnp.tanh(0.5 * (z - maxlv_ref[...])) + 0.5
    mean_ref[...] = mean
    var_ref[...] = evmin_ref[...] + evmax_ref[...] * sig  # ret_logvar=False path


# ---------------------------------------------------------------------------
# Parameter preparation (off hot path): fold normalization into fc1, pad to
# MXU-aligned shapes, merge fc4 heads, precompute exp(min/max logvar).
# Returns (arrays, dims) — dims is a plain Python dict (kept static).
# ---------------------------------------------------------------------------
def prepare_params(p, *, use_bf16=True):
    in_f = int(p["inputs_mu"].shape[-1])
    out_f = int(p["w4"].shape[1])
    half = out_f // 2
    h_p = _round_up(HIDDEN, 128)       # 200 -> 256
    half_p = _round_up(half, 128)      # -> 128

    wdt = jnp.bfloat16 if use_bf16 else jnp.float32

    def pad2(a, rows, cols, fill=0.0):
        a = jnp.asarray(a, jnp.float32)
        return jnp.pad(a, ((0, rows - a.shape[0]), (0, cols - a.shape[1])),
                       constant_values=fill)

    mu = jnp.asarray(p["inputs_mu"], jnp.float32)
    sigma = jnp.asarray(p["inputs_sigma"], jnp.float32)
    # same guard as fit_input_stats for un-fitted sigma
    inv_sigma = jnp.where(sigma < 1e-12, 1.0, 1.0 / jnp.maximum(sigma, 1e-12))

    w1 = jnp.asarray(p["w1"], jnp.float32)
    b1 = jnp.asarray(p["b1"], jnp.float32)
    # fold (x - mu) * inv_sigma into fc1
    w1f = w1 * inv_sigma.reshape(in_f, 1)
    b1f = b1 - (mu * inv_sigma) @ w1

    # merged fc4: each head zero-padded to half_p columns, then concatenated so
    # the in-kernel split lands exactly on a 128-lane boundary.
    w4 = jnp.asarray(p["w4"], jnp.float32)
    b4 = jnp.asarray(p["b4"], jnp.float32)
    w4c = jnp.concatenate([pad2(w4[:, :half], h_p, half_p),
                           pad2(w4[:, half:], h_p, half_p)], axis=1)
    b4c = jnp.concatenate([pad2(b4[:, :half], 1, half_p),
                           pad2(b4[:, half:], 1, half_p)], axis=1)

    max_lv = pad2(p["max_logvar"], 1, half_p, fill=0.5)
    min_lv = pad2(p["min_logvar"], 1, half_p, fill=-10.0)

    arrays = {
        "w1": pad2(w1f, in_f, h_p).astype(wdt), "b1": pad2(b1f, 1, h_p),
        "w2": pad2(p["w2"], h_p, h_p).astype(wdt), "b2": pad2(p["b2"], 1, h_p),
        "w3": pad2(p["w3"], h_p, h_p).astype(wdt), "b3": pad2(p["b3"], 1, h_p),
        "w4": w4c.astype(wdt), "b4": b4c,
        "max_logvar": max_lv,
        "exp_min_logvar": jnp.exp(min_lv),
        "exp_max_logvar": jnp.exp(max_lv),
    }
    dims = {"in_f": in_f, "half": half, "h_p": h_p, "half_p": half_p}
    return arrays, dims


# ---------------------------------------------------------------------------
# Wrapper.  `dims` and `batch_tile` must be bound as Python constants (e.g. via
# functools.partial) so shapes stay static under jit.
# ---------------------------------------------------------------------------
def ptmodel_forward(x, params, *, dims, batch_tile=512):
    in_f, half = dims["in_f"], dims["half"]
    h_p, half_p = dims["h_p"], dims["half_p"]

    B = x.shape[0]
    B8 = _round_up(max(B, 1), 8)
    if B8 <= batch_tile:
        bt = B8                      # single grid step: full MXU row occupancy
    else:
        bt = batch_tile              # large B: tile in batch_tile-row chunks
    B_pad = _round_up(B, bt)
    grid = (B_pad // bt,)

    x = jnp.asarray(x, jnp.float32)
    if B_pad != B:
        x = jnp.pad(x, ((0, B_pad - B), (0, 0)))

    const2d = lambda shape: pl.BlockSpec(shape, lambda i: (0, 0))

    grid_spec = pltpu.PrefetchScalarGridSpec(
        num_scalar_prefetch=0,
        grid=grid,
        in_specs=[
            pl.BlockSpec((bt, in_f), lambda i: (i, 0)),     # x (feature dim = full dim)
            const2d((in_f, h_p)), const2d((1, h_p)),        # fc1 (norm folded in)
            const2d((h_p, h_p)), const2d((1, h_p)),         # fc2
            const2d((h_p, h_p)), const2d((1, h_p)),         # fc3
            const2d((h_p, 2 * half_p)), const2d((1, 2 * half_p)),  # fc4 merged
            const2d((1, half_p)),                           # max_logvar
            const2d((1, half_p)),                           # exp(min_logvar)
            const2d((1, half_p)),                           # exp(max_logvar)
        ],
        out_specs=[
            pl.BlockSpec((bt, half_p), lambda i: (i, 0)),   # mean (padded)
            pl.BlockSpec((bt, half_p), lambda i: (i, 0)),   # variance (padded)
        ],
    )

    mean_p, var_p = pl.pallas_call(
        ptmodel_kernel,
        out_shape=(
            jax.ShapeDtypeStruct((B_pad, half_p), jnp.float32),
            jax.ShapeDtypeStruct((B_pad, half_p), jnp.float32),
        ),
        grid_spec=grid_spec,
        compiler_params=pltpu.CompilerParams(
            dimension_semantics=("parallel",)),
    )(x,
      params["w1"], params["b1"], params["w2"], params["b2"],
      params["w3"], params["b3"], params["w4"], params["b4"],
      params["max_logvar"], params["exp_min_logvar"], params["exp_max_logvar"])

    return mean_p[:B, :half], var_p[:B, :half]


# ---------------------------------------------------------------------------
# Pure-JAX reference (original, unfused math on unpadded params)
# ---------------------------------------------------------------------------
def reference_forward(x, p):
    h = (x - p["inputs_mu"]) / p["inputs_sigma"]
    h = h @ p["w1"] + p["b1"]; h = h * jax.nn.sigmoid(h)
    h = h @ p["w2"] + p["b2"]; h = h * jax.nn.sigmoid(h)
    h = h @ p["w3"] + p["b3"]; h = h * jax.nn.sigmoid(h)
    out = h @ p["w4"] + p["b4"]
    half = p["max_logvar"].shape[-1]
    mean = out[:, :half]
    logvar = out[:, half:]
    logvar = p["max_logvar"] - jax.nn.softplus(p["max_logvar"] - logvar)
    logvar = p["min_logvar"] + jax.nn.softplus(logvar - p["min_logvar"])
    return mean, jnp.exp(logvar)


def init_params(key, in_features, out_features):
    ks = jax.random.split(key, 8)

    def lin(kw, kb, fan_in, fan_out):
        scale = 1.0 / jnp.sqrt(jnp.float32(fan_in))
        w = jax.random.uniform(kw, (fan_in, fan_out), jnp.float32, -scale, scale)
        b = jax.random.uniform(kb, (1, fan_out), jnp.float32, -scale, scale)
        return w, b

    w1, b1 = lin(ks[0], ks[1], in_features, HIDDEN)
    w2, b2 = lin(ks[2], ks[3], HIDDEN, HIDDEN)
    w3, b3 = lin(ks[4], ks[5], HIDDEN, HIDDEN)
    w4, b4 = lin(ks[6], ks[7], HIDDEN, out_features)
    half = out_features // 2
    return {
        # NOTE: the module inits sigma to zeros (div-by-zero until
        # fit_input_stats); we use sigma=1 so the forward is well defined.
        "inputs_mu": jnp.zeros((1, in_features), jnp.float32),
        "inputs_sigma": jnp.ones((1, in_features), jnp.float32),
        "w1": w1, "b1": b1, "w2": w2, "b2": b2,
        "w3": w3, "b3": b3, "w4": w4, "b4": b4,
        "max_logvar": jnp.full((1, half), 0.5, jnp.float32),
        "min_logvar": jnp.full((1, half), -10.0, jnp.float32),
    }


if __name__ == "__main__":
    key = jax.random.PRNGKey(0)
    kx, kp = jax.random.split(key)

    B, IN_F, OUT_F = 16, 24, 16   # small shapes; out//2 = 8
    x = jax.random.normal(kx, (B, IN_F), jnp.float32)
    params = init_params(kp, IN_F, OUT_F)

    mean_ref, var_ref = reference_forward(x, params)

    # TODO(synk): QPyLinear quantization (q_specs != None) path not implemented;
    # this covers the q_specs=None plain-linear forward (ret_logvar=False).

    # ---- f32 path: strict correctness check ----
    arrays32, dims32 = prepare_params(params, use_bf16=False)
    fwd32 = jax.jit(functools.partial(ptmodel_forward, dims=dims32, batch_tile=512))
    mean32, var32 = fwd32(x, arrays32)
    jax.block_until_ready((mean32, var32))
    assert jnp.allclose(mean32, mean_ref, atol=1e-4, rtol=1e-4)
    assert jnp.allclose(var32, var_ref, atol=1e-4, rtol=1e-4)

    # ---- bf16 production path: native MXU rate, looser tolerance ----
    arrays16, dims16 = prepare_params(params, use_bf16=True)
    fwd16 = jax.jit(functools.partial(ptmodel_forward, dims=dims16, batch_tile=512))
    mean16, var16 = fwd16(x, arrays16)
    jax.block_until_ready((mean16, var16))
    assert jnp.allclose(mean16, mean_ref, atol=5e-2, rtol=5e-2)
    assert jnp.allclose(var16, var_ref, atol=5e-2, rtol=5e-2)

    print("KERNEL_OK")
</pallas_src>

<mosaic_0001>
module attributes {stable_mosaic.version = 11 : i64} {
  func.func @ptmodel_kernel(%arg0: i32, %arg1: memref<16x24xf32, #tpu.memory_space<vmem>>, %arg2: memref<24x256xf32, #tpu.memory_space<vmem>>, %arg3: memref<1x256xf32, #tpu.memory_space<vmem>>, %arg4: memref<256x256xf32, #tpu.memory_space<vmem>>, %arg5: memref<1x256xf32, #tpu.memory_space<vmem>>, %arg6: memref<256x256xf32, #tpu.memory_space<vmem>>, %arg7: memref<1x256xf32, #tpu.memory_space<vmem>>, %arg8: memref<256x256xf32, #tpu.memory_space<vmem>>, %arg9: memref<1x256xf32, #tpu.memory_space<vmem>>, %arg10: memref<1x128xf32, #tpu.memory_space<vmem>>, %arg11: memref<1x128xf32, #tpu.memory_space<vmem>>, %arg12: memref<1x128xf32, #tpu.memory_space<vmem>>, %arg13: memref<16x128xf32, #tpu.memory_space<vmem>>, %arg14: memref<16x128xf32, #tpu.memory_space<vmem>>) attributes {dimension_semantics = [#tpu.dimension_semantics<parallel>], iteration_bounds = array<i64: 1>, scalar_prefetch = 0 : i64, scratch_operands = 0 : i64, tpu.core_type = #tpu.core_type<tc>, window_params = [{transform_indices = @transform_0, window_bounds = array<i64: 16, 24>}, {pipeline_mode = #tpu.pipeline_mode<synchronous>, transform_indices = @transform_1, window_bounds = array<i64: 24, 256>}, {pipeline_mode = #tpu.pipeline_mode<synchronous>, transform_indices = @transform_2, window_bounds = array<i64: 1, 256>}, {pipeline_mode = #tpu.pipeline_mode<synchronous>, transform_indices = @transform_3, window_bounds = array<i64: 256, 256>}, {pipeline_mode = #tpu.pipeline_mode<synchronous>, transform_indices = @transform_4, window_bounds = array<i64: 1, 256>}, {pipeline_mode = #tpu.pipeline_mode<synchronous>, transform_indices = @transform_5, window_bounds = array<i64: 256, 256>}, {pipeline_mode = #tpu.pipeline_mode<synchronous>, transform_indices = @transform_6, window_bounds = array<i64: 1, 256>}, {pipeline_mode = #tpu.pipeline_mode<synchronous>, transform_indices = @transform_7, window_bounds = array<i64: 256, 256>}, {pipeline_mode = #tpu.pipeline_mode<synchronous>, transform_indices = @transform_8, window_bounds = array<i64: 1, 256>}, {pipeline_mode = #tpu.pipeline_mode<synchronous>, transform_indices = @transform_9, window_bounds = array<i64: 1, 128>}, {pipeline_mode = #tpu.pipeline_mode<synchronous>, transform_indices = @transform_10, window_bounds = array<i64: 1, 128>}, {pipeline_mode = #tpu.pipeline_mode<synchronous>, transform_indices = @transform_11, window_bounds = array<i64: 1, 128>}, {transform_indices = @transform_12, window_bounds = array<i64: 16, 128>}, {transform_indices = @transform_13, window_bounds = array<i64: 16, 128>}]} {
    %c0 = arith.constant 0 : index
    %c0_0 = arith.constant 0 : index
    %0 = vector.load %arg1[%c0, %c0_0] : memref<16x24xf32, #tpu.memory_space<vmem>>, vector<16x24xf32>
    %c0_1 = arith.constant 0 : index
    %c0_2 = arith.constant 0 : index
    %1 = vector.load %arg2[%c0_1, %c0_2] : memref<24x256xf32, #tpu.memory_space<vmem>>, vector<24x256xf32>
    %cst = arith.constant dense<0.000000e+00> : vector<16x256xf32>
    %2 = tpu.matmul %0, %1, %cst {dimension_numbers = #tpu.dot_dimension_numbers<[1], [0], [0], [1], [0, 0, 1, 1], [], []>} : vector<16x24xf32>, vector<24x256xf32>, vector<16x256xf32> -> vector<16x256xf32>
    %c0_3 = arith.constant 0 : index
    %c0_4 = arith.constant 0 : index
    %3 = vector.load %arg3[%c0_3, %c0_4] : memref<1x256xf32, #tpu.memory_space<vmem>>, vector<1x256xf32>
    %4 = vector.broadcast %3 : vector<1x256xf32> to vector<16x256xf32>
    %5 = arith.addf %2, %4 : vector<16x256xf32>
    %cst_5 = arith.constant 5.000000e-01 : f32
    %6 = vector.broadcast %cst_5 : f32 to vector<16x256xf32>
    %7 = arith.mulf %6, %5 : vector<16x256xf32>
    %8 = math.tanh %7 : vector<16x256xf32>
    %cst_6 = arith.constant 5.000000e-01 : f32
    %9 = vector.broadcast %cst_6 : f32 to vector<16x256xf32>
    %10 = arith.mulf %9, %8 : vector<16x256xf32>
    %cst_7 = arith.constant 5.000000e-01 : f32
    %11 = vector.broadcast %cst_7 : f32 to vector<16x256xf32>
    %12 = arith.addf %10, %11 : vector<16x256xf32>
    %13 = arith.mulf %5, %12 : vector<16x256xf32>
    %c0_8 = arith.constant 0 : index
    %c0_9 = arith.constant 0 : index
    %14 = vector.load %arg4[%c0_8, %c0_9] : memref<256x256xf32, #tpu.memory_space<vmem>>, vector<256x256xf32>
    %cst_10 = arith.constant dense<0.000000e+00> : vector<16x256xf32>
    %15 = tpu.matmul %13, %14, %cst_10 {dimension_numbers = #tpu.dot_dimension_numbers<[1], [0], [0], [1], [0, 0, 1, 1], [], []>} : vector<16x256xf32>, vector<256x256xf32>, vector<16x256xf32> -> vector<16x256xf32>
    %c0_11 = arith.constant 0 : index
    %c0_12 = arith.constant 0 : index
    %16 = vector.load %arg5[%c0_11, %c0_12] : memref<1x256xf32, #tpu.memory_space<vmem>>, vector<1x256xf32>
    %17 = vector.broadcast %16 : vector<1x256xf32> to vector<16x256xf32>
    %18 = arith.addf %15, %17 : vector<16x256xf32>
    %cst_13 = arith.constant 5.000000e-01 : f32
    %19 = vector.broadcast %cst_13 : f32 to vector<16x256xf32>
    %20 = arith.mulf %19, %18 : vector<16x256xf32>
    %21 = math.tanh %20 : vector<16x256xf32>
    %cst_14 = arith.constant 5.000000e-01 : f32
    %22 = vector.broadcast %cst_14 : f32 to vector<16x256xf32>
    %23 = arith.mulf %22, %21 : vector<16x256xf32>
    %cst_15 = arith.constant 5.000000e-01 : f32
    %24 = vector.broadcast %cst_15 : f32 to vector<16x256xf32>
    %25 = arith.addf %23, %24 : vector<16x256xf32>
    %26 = arith.mulf %18, %25 : vector<16x256xf32>
    %c0_16 = arith.constant 0 : index
    %c0_17 = arith.constant 0 : index
    %27 = vector.load %arg6[%c0_16, %c0_17] : memref<256x256xf32, #tpu.memory_space<vmem>>, vector<256x256xf32>
    %cst_18 = arith.constant dense<0.000000e+00> : vector<16x256xf32>
    %28 = tpu.matmul %26, %27, %cst_18 {dimension_numbers = #tpu.dot_dimension_numbers<[1], [0], [0], [1], [0, 0, 1, 1], [], []>} : vector<16x256xf32>, vector<256x256xf32>, vector<16x256xf32> -> vector<16x256xf32>
    %c0_19 = arith.constant 0 : index
    %c0_20 = arith.constant 0 : index
    %29 = vector.load %arg7[%c0_19, %c0_20] : memref<1x256xf32, #tpu.memory_space<vmem>>, vector<1x256xf32>
    %30 = vector.broadcast %29 : vector<1x256xf32> to vector<16x256xf32>
    %31 = arith.addf %28, %30 : vector<16x256xf32>
    %cst_21 = arith.constant 5.000000e-01 : f32
    %32 = vector.broadcast %cst_21 : f32 to vector<16x256xf32>
    %33 = arith.mulf %32, %31 : vector<16x256xf32>
    %34 = math.tanh %33 : vector<16x256xf32>
    %cst_22 = arith.constant 5.000000e-01 : f32
    %35 = vector.broadcast %cst_22 : f32 to vector<16x256xf32>
    %36 = arith.mulf %35, %34 : vector<16x256xf32>
    %cst_23 = arith.constant 5.000000e-01 : f32
    %37 = vector.broadcast %cst_23 : f32 to vector<16x256xf32>
    %38 = arith.addf %36, %37 : vector<16x256xf32>
    %39 = arith.mulf %31, %38 : vector<16x256xf32>
    %c0_24 = arith.constant 0 : index
    %c0_25 = arith.constant 0 : index
    %40 = vector.load %arg8[%c0_24, %c0_25] : memref<256x256xf32, #tpu.memory_space<vmem>>, vector<256x256xf32>
    %cst_26 = arith.constant dense<0.000000e+00> : vector<16x256xf32>
    %41 = tpu.matmul %39, %40, %cst_26 {dimension_numbers = #tpu.dot_dimension_numbers<[1], [0], [0], [1], [0, 0, 1, 1], [], []>} : vector<16x256xf32>, vector<256x256xf32>, vector<16x256xf32> -> vector<16x256xf32>
    %c0_27 = arith.constant 0 : index
    %c0_28 = arith.constant 0 : index
    %42 = vector.load %arg9[%c0_27, %c0_28] : memref<1x256xf32, #tpu.memory_space<vmem>>, vector<1x256xf32>
    %43 = vector.broadcast %42 : vector<1x256xf32> to vector<16x256xf32>
    %44 = arith.addf %41, %43 : vector<16x256xf32>
    %45 = vector.extract_strided_slice %44 {offsets = [0, 0], sizes = [16, 128], strides = [1, 1]} : vector<16x256xf32> to vector<16x128xf32>
    %46 = vector.extract_strided_slice %44 {offsets = [0, 128], sizes = [16, 128], strides = [1, 1]} : vector<16x256xf32> to vector<16x128xf32>
    %c0_29 = arith.constant 0 : index
    %c0_30 = arith.constant 0 : index
    %47 = vector.load %arg10[%c0_29, %c0_30] : memref<1x128xf32, #tpu.memory_space<vmem>>, vector<1x128xf32>
    %48 = vector.broadcast %47 : vector<1x128xf32> to vector<16x128xf32>
    %49 = arith.subf %46, %48 : vector<16x128xf32>
    %cst_31 = arith.constant 5.000000e-01 : f32
    %50 = vector.broadcast %cst_31 : f32 to vector<16x128xf32>
    %51 = arith.mulf %50, %49 : vector<16x128xf32>
    %52 = math.tanh %51 : vector<16x128xf32>
    %cst_32 = arith.constant 5.000000e-01 : f32
    %53 = vector.broadcast %cst_32 : f32 to vector<16x128xf32>
    %54 = arith.mulf %53, %52 : vector<16x128xf32>
    %cst_33 = arith.constant 5.000000e-01 : f32
    %55 = vector.broadcast %cst_33 : f32 to vector<16x128xf32>
    %56 = arith.addf %54, %55 : vector<16x128xf32>
    %c0_34 = arith.constant 0 : index
    %c0_35 = arith.constant 0 : index
    %57 = vector.load %arg13[%c0_34, %c0_35] : memref<16x128xf32, #tpu.memory_space<vmem>>, vector<16x128xf32>
    tpu.vector_store %arg13[%c0_34, %c0_35], %45 {strides = array<i32>} : memref<16x128xf32, #tpu.memory_space<vmem>>, vector<16x128xf32>,
    %c0_36 = arith.constant 0 : index
    %c0_37 = arith.constant 0 : index
    %58 = vector.load %arg11[%c0_36, %c0_37] : memref<1x128xf32, #tpu.memory_space<vmem>>, vector<1x128xf32>
    %c0_38 = arith.constant 0 : index
    %c0_39 = arith.constant 0 : index
    %59 = vector.load %arg12[%c0_38, %c0_39] : memref<1x128xf32, #tpu.memory_space<vmem>>, vector<1x128xf32>
    %60 = vector.broadcast %59 : vector<1x128xf32> to vector<16x128xf32>
    %61 = arith.mulf %60, %56 : vector<16x128xf32>
    %62 = vector.broadcast %58 : vector<1x128xf32> to vector<16x128xf32>
    %63 = arith.addf %62, %61 : vector<16x128xf32>
    %c0_40 = arith.constant 0 : index
    %c0_41 = arith.constant 0 : index
    %64 = vector.load %arg14[%c0_40, %c0_41] : memref<16x128xf32, #tpu.memory_space<vmem>>, vector<16x128xf32>
    tpu.vector_store %arg14[%c0_40, %c0_41], %63 {strides = array<i32>} : memref<16x128xf32, #tpu.memory_space<vmem>>, vector<16x128xf32>,
    return
  }
  func.func @transform_0(%arg0: i32) -> (i32, i32) {
    %c0_i32 = arith.constant 0 : i32
    %c0_i32_0 = arith.constant 0 : i32
    return %arg0, %c0_i32 : i32, i32
  }
  func.func @transform_1(%arg0: i32) -> (i32, i32) {
    %c0_i32 = arith.constant 0 : i32
    %c0_i32_0 = arith.constant 0 : i32
    %c0_i32_1 = arith.constant 0 : i32
    return %c0_i32, %c0_i32_0 : i32, i32
  }
  func.func @transform_2(%arg0: i32) -> (i32, i32) {
    %c0_i32 = arith.constant 0 : i32
    %c0_i32_0 = arith.constant 0 : i32
    %c0_i32_1 = arith.constant 0 : i32
    return %c0_i32, %c0_i32_0 : i32, i32
  }
  func.func @transform_3(%arg0: i32) -> (i32, i32) {
    %c0_i32 = arith.constant 0 : i32
    %c0_i32_0 = arith.constant 0 : i32
    %c0_i32_1 = arith.constant 0 : i32
    return %c0_i32, %c0_i32_0 : i32, i32
  }
  func.func @transform_4(%arg0: i32) -> (i32, i32) {
    %c0_i32 = arith.constant 0 : i32
    %c0_i32_0 = arith.constant 0 : i32
    %c0_i32_1 = arith.constant 0 : i32
    return %c0_i32, %c0_i32_0 : i32, i32
  }
  func.func @transform_5(%arg0: i32) -> (i32, i32) {
    %c0_i32 = arith.constant 0 : i32
    %c0_i32_0 = arith.constant 0 : i32
    %c0_i32_1 = arith.constant 0 : i32
    return %c0_i32, %c0_i32_0 : i32, i32
  }
  func.func @transform_6(%arg0: i32) -> (i32, i32) {
    %c0_i32 = arith.constant 0 : i32
    %c0_i32_0 = arith.constant 0 : i32
    %c0_i32_1 = arith.constant 0 : i32
    return %c0_i32, %c0_i32_0 : i32, i32
  }
  func.func @transform_7(%arg0: i32) -> (i32, i32) {
    %c0_i32 = arith.constant 0 : i32
    %c0_i32_0 = arith.constant 0 : i32
    %c0_i32_1 = arith.constant 0 : i32
    return %c0_i32, %c0_i32_0 : i32, i32
  }
  func.func @transform_8(%arg0: i32) -> (i32, i32) {
    %c0_i32 = arith.constant 0 : i32
    %c0_i32_0 = arith.constant 0 : i32
    %c0_i32_1 = arith.constant 0 : i32
    return %c0_i32, %c0_i32_0 : i32, i32
  }
  func.func @transform_9(%arg0: i32) -> (i32, i32) {
    %c0_i32 = arith.constant 0 : i32
    %c0_i32_0 = arith.constant 0 : i32
    %c0_i32_1 = arith.constant 0 : i32
    return %c0_i32, %c0_i32_0 : i32, i32
  }
  func.func @transform_10(%arg0: i32) -> (i32, i32) {
    %c0_i32 = arith.constant 0 : i32
    %c0_i32_0 = arith.constant 0 : i32
    %c0_i32_1 = arith.constant 0 : i32
    return %c0_i32, %c0_i32_0 : i32, i32
  }
  func.func @transform_11(%arg0: i32) -> (i32, i32) {
    %c0_i32 = arith.constant 0 : i32
    %c0_i32_0 = arith.constant 0 : i32
    %c0_i32_1 = arith.constant 0 : i32
    return %c0_i32, %c0_i32_0 : i32, i32
  }
  func.func @transform_12(%arg0: i32) -> (i32, i32) {
    %c0_i32 = arith.constant 0 : i32
    %c0_i32_0 = arith.constant 0 : i32
    return %arg0, %c0_i32 : i32, i32
  }
  func.func @transform_13(%arg0: i32) -> (i32, i32) {
    %c0_i32 = arith.constant 0 : i32
    %c0_i32_0 = arith.constant 0 : i32
    return %arg0, %c0_i32 : i32, i32
  }
}

</mosaic_0001>

<llo_original>
// kernel: ptmodel_forward.1
$region0: #{ptmodel_forward.1}
  #allocation0 [shape = 'u32[]', space=smem, size = 0x4, offset = 0x4, fixed_abs, tag = 'smem constant byte address 0x4 - core index']
  #allocation1 [shape = 'u32[144,128]{1,0:T(1,128)}', space=vmem, size = 0x12000, scoped, tag = 'internal scratch']
  %s0 = inlined_call_operand.hbm [shape: f32[16,24], index: 0, kind: input, shape index: {}]
  %s1 = inlined_call_operand.hbm [shape: f32[24,256], index: 1, kind: input, shape index: {}]
  %s2 = inlined_call_operand.vmem [shape: f32[1,256], index: 2, kind: input, shape index: {}]
  %s3 = inlined_call_operand.hbm [shape: f32[256,256], index: 3, kind: input, shape index: {}]
  %s4 = inlined_call_operand.vmem [shape: f32[1,256], index: 4, kind: input, shape index: {}]
  %s5 = inlined_call_operand.hbm [shape: f32[256,256], index: 5, kind: input, shape index: {}]
  %s6 = inlined_call_operand.vmem [shape: f32[1,256], index: 6, kind: input, shape index: {}]
  %s7 = inlined_call_operand.hbm [shape: f32[256,256], index: 7, kind: input, shape index: {}]
  %s8 = inlined_call_operand.vmem [shape: f32[1,256], index: 8, kind: input, shape index: {}]
  %s9 = inlined_call_operand.vmem [shape: f32[1,128], index: 9, kind: input, shape index: {}]
  %s10 = inlined_call_operand.vmem [shape: f32[1,128], index: 10, kind: input, shape index: {}]
  %s11 = inlined_call_operand.vmem [shape: f32[1,128], index: 11, kind: input, shape index: {}]
  %s12 = inlined_call_operand.vmem [shape: f32[16,128], index: 12, kind: output, shape index: {0}]
  %s13 = inlined_call_operand.vmem [shape: f32[16,128], index: 13, kind: output, shape index: {1}]
  %14 = xla_tuple %s12, %s13
  %s15 = sld [smem:[#allocation0]]
  $region86: #{ptmodel_forward.1} parent=0
    _
  %s17 = ssub.s32 1, %s15
  %s18 = scalar_select 0, %s17, %s15
  $region1: #{ptmodel_forward.1} parent=0
    #allocation2 [shape = 'u8[8192]{0}', space=vmem, size = 0x2000, scoped, tag = 'input window, operand 0, single buffered']
    #allocation3 [shape = 's32[1]{0}', space=sflag, size = 0x4, scoped, tag = 'scoped memory for ptmodel_forward.1']
    #allocation4 [shape = 'u8[24576]{0}', space=vmem, size = 0x6000, scoped, tag = 'input window, operand 1, single buffered']
    #allocation5 [shape = 's32[1]{0}', space=sflag, size = 0x4, scoped, tag = 'scoped memory for ptmodel_forward.1']
    #allocation6 [shape = 'u8[262144]{0}', space=vmem, size = 0x40000, scoped, tag = 'input window, operand 3, single buffered']
    #allocation7 [shape = 'u8[262144]{0}', space=vmem, size = 0x40000, scoped, tag = 'input window, operand 5, single buffered']
    #allocation8 [shape = 's32[1]{0}', space=sflag, size = 0x4, scoped, tag = 'scoped memory for ptmodel_forward.1']
    #allocation9 [shape = 'u8[262144]{0}', space=vmem, size = 0x40000, scoped, tag = 'input window, operand 7, single buffered']
    %19 = vsyncpa [#allocation3], 0
    %20 = vsyncpa [#allocation5], 0
    %21 = vsyncpa [#allocation8], 0
    // Predicated region
    $region2: #{ptmodel_forward.1} parent=1 // pred_check
      _
    $region3: #{ptmodel_forward.1} parent=1 // pred_check_branch
      %23 = sbr.rel (0) target = $region5
    $region4: #{ptmodel_forward.1} parent=1 // pred_region
      %s25 = ssub.s32 256, 256
      %26 = vsyncadd [#allocation3], %s25
      %s27 = sshll.u32 [#allocation2], 4
      %s28 = int_to_ptr.vmem [resolvable:$true] %s27
      %33 = dma.hbm_to_vmem [thread:$0]  %s0, 256, %s28, [#allocation3], 128, 128, 8
    $region5: #{ptmodel_forward.1} parent=1 // pred_fallthru
      _
    // Predicated region
    $region6: #{ptmodel_forward.1} parent=1 // pred_check
      _
    $region7: #{ptmodel_forward.1} parent=1 // pred_check_branch
      %35 = sbr.rel (0) target = $region9
    $region8: #{ptmodel_forward.1} parent=1 // pred_region
      %s37 = ssub.s32 768, 768
      %38 = vsyncadd [#allocation5], %s37
      %s39 = sshll.u32 [#allocation4], 4
      %s40 = int_to_ptr.vmem [resolvable:$true] %s39
      %45 = dma.hbm_to_vmem [thread:$0]  %s1, 768, %s40, [#allocation5], 256, 256, 16
    $region9: #{ptmodel_forward.1} parent=1 // pred_fallthru
      _
    // Predicated region
    $region10: #{ptmodel_forward.1} parent=1 // pred_check
      _
    $region11: #{ptmodel_forward.1} parent=1 // pred_check_branch
      %47 = sbr.rel (0) target = $region13
    $region12: #{ptmodel_forward.1} parent=1 // pred_region
      _
    $region13: #{ptmodel_forward.1} parent=1 // pred_fallthru
      _
    // Predicated region
    $region14: #{ptmodel_forward.1} parent=1 // pred_check
      _
    $region15: #{ptmodel_forward.1} parent=1 // pred_check_branch
      %49 = sbr.rel (0) target = $region17
    $region16: #{ptmodel_forward.1} parent=1 // pred_region
      %s51 = ssub.s32 8192, 8192
      %52 = vsyncadd [#allocation5], %s51
      %s53 = sshll.u32 [#allocation6], 4
      %s54 = int_to_ptr.vmem [resolvable:$true] %s53
      %59 = dma.hbm_to_vmem [thread:$0]  %s3, 8192, %s54, [#allocation5], 256, 256, 16
    $region17: #{ptmodel_forward.1} parent=1 // pred_fallthru
      _
    // Predicated region
    $region18: #{ptmodel_forward.1} parent=1 // pred_check
      _
    $region19: #{ptmodel_forward.1} parent=1 // pred_check_branch
      %61 = sbr.rel (0) target = $region21
    $region20: #{ptmodel_forward.1} parent=1 // pred_region
      _
    $region21: #{ptmodel_forward.1} parent=1 // pred_fallthru
      _
    // Predicated region
    $region22: #{ptmodel_forward.1} parent=1 // pred_check
      _
    $region23: #{ptmodel_forward.1} parent=1 // pred_check_branch
      %63 = sbr.rel (0) target = $region25
    $region24: #{ptmodel_forward.1} parent=1 // pred_region
      %s65 = ssub.s32 8192, 8192
      %66 = vsyncadd [#allocation8], %s65
      %s67 = sshll.u32 [#allocation7], 4
      %s68 = int_to_ptr.vmem [resolvable:$true] %s67
      %73 = dma.hbm_to_vmem [thread:$0]  %s5, 8192, %s68, [#allocation8], 256, 256, 16
    $region25: #{ptmodel_forward.1} parent=1 // pred_fallthru
      _
    // Predicated region
    $region26: #{ptmodel_forward.1} parent=1 // pred_check
      _
    $region27: #{ptmodel_forward.1} parent=1 // pred_check_branch
      %75 = sbr.rel (0) target = $region29
    $region28: #{ptmodel_forward.1} parent=1 // pred_region
      _
    $region29: #{ptmodel_forward.1} parent=1 // pred_fallthru
      _
    // Predicated region
    $region30: #{ptmodel_forward.1} parent=1 // pred_check
      _
    $region31: #{ptmodel_forward.1} parent=1 // pred_check_branch
      %77 = sbr.rel (0) target = $region33
    $region32: #{ptmodel_forward.1} parent=1 // pred_region
      %s79 = ssub.s32 8192, 8192
      %80 = vsyncadd [#allocation8], %s79
      %s81 = sshll.u32 [#allocation9], 4
      %s82 = int_to_ptr.vmem [resolvable:$true] %s81
      %87 = dma.hbm_to_vmem [thread:$0]  %s7, 8192, %s82, [#allocation8], 256, 256, 16
    $region33: #{ptmodel_forward.1} parent=1 // pred_fallthru
      _
    // Predicated region
    $region34: #{ptmodel_forward.1} parent=1 // pred_check
      _
    $region35: #{ptmodel_forward.1} parent=1 // pred_check_branch
      %89 = sbr.rel (0) target = $region37
    $region36: #{ptmodel_forward.1} parent=1 // pred_region
      _
    $region37: #{ptmodel_forward.1} parent=1 // pred_fallthru
      _
    // Predicated region
    $region38: #{ptmodel_forward.1} parent=1 // pred_check
      _
    $region39: #{ptmodel_forward.1} parent=1 // pred_check_branch
      %91 = sbr.rel (0) target = $region41
    $region40: #{ptmodel_forward.1} parent=1 // pred_region
      _
    $region41: #{ptmodel_forward.1} parent=1 // pred_fallthru
      _
    // Predicated region
    $region42: #{ptmodel_forward.1} parent=1 // pred_check
      _
    $region43: #{ptmodel_forward.1} parent=1 // pred_check_branch
      %93 = sbr.rel (0) target = $region45
    $region44: #{ptmodel_forward.1} parent=1 // pred_region
      _
    $region45: #{ptmodel_forward.1} parent=1 // pred_fallthru
      _
    // Predicated region
    $region46: #{ptmodel_forward.1} parent=1 // pred_check
      _
    $region47: #{ptmodel_forward.1} parent=1 // pred_check_branch
      %95 = sbr.rel (0) target = $region49
    $region48: #{ptmodel_forward.1} parent=1 // pred_region
      _
    $region49: #{ptmodel_forward.1} parent=1 // pred_fallthru
      _
    // Predicated region
    $region50: #{ptmodel_forward.1} parent=1 // pred_check
      _
    $region51: #{ptmodel_forward.1} parent=1 // pred_check_branch
      %97 = sbr.rel (0) target = $region53
    $region52: #{ptmodel_forward.1} parent=1 // pred_region
      %98 = dma.done [#allocation3], 256
    $region53: #{ptmodel_forward.1} parent=1 // pred_fallthru
      _
    // Predicated region
    $region54: #{ptmodel_forward.1} parent=1 // pred_check
      _
    $region55: #{ptmodel_forward.1} parent=1 // pred_check_branch
      %100 = sbr.rel (0) target = $region57
    $region56: #{ptmodel_forward.1} parent=1 // pred_region
      %101 = dma.done [#allocation5], 768
    $region57: #{ptmodel_forward.1} parent=1 // pred_fallthru
      _
    // Predicated region
    $region58: #{ptmodel_forward.1} parent=1 // pred_check
      _
    $region59: #{ptmodel_forward.1} parent=1 // pred_check_branch
      %103 = sbr.rel (0) target = $region61
    $region60: #{ptmodel_forward.1} parent=1 // pred_region
      %104 = dma.done [#allocation5], 8192
    $region61: #{ptmodel_forward.1} parent=1 // pred_fallthru
      _
    // Predicated region
    $region62: #{ptmodel_forward.1} parent=1 // pred_check
      _
    $region63: #{ptmodel_forward.1} parent=1 // pred_check_branch
      %106 = sbr.rel (0) target = $region65
    $region64: #{ptmodel_forward.1} parent=1 // pred_region
      %107 = dma.done [#allocation8], 8192
    $region65: #{ptmodel_forward.1} parent=1 // pred_fallthru
      _
    // Predicated region
    $region66: #{ptmodel_forward.1} parent=1 // pred_check
      _
    $region67: #{ptmodel_forward.1} parent=1 // pred_check_branch
      %109 = sbr.rel (0) target = $region69
    $region68: #{ptmodel_forward.1} parent=1 // pred_region
      %110 = dma.done [#allocation8], 8192
    $region69: #{ptmodel_forward.1} parent=1 // pred_fallthru
      _
    %v111 = vld [vmem:[#allocation2] sm:$0xff]
    %v112 = vld [vmem:[#allocation2 + $0x8] sm:$0xff]
    %v113 = vld [vmem:[#allocation4] sm:$0xff]
    %v114 = vld [vmem:[#allocation4 + $0x8] sm:$0xff]
    %v115 = vld [vmem:[#allocation4 + $0x10] sm:$0xff]
    %v116 = vld [vmem:[#allocation4 + $0x18] sm:$0xff]
    %v117 = vld [vmem:[#allocation4 + $0x20] sm:$0xff]
    %v118 = vld [vmem:[#allocation4 + $0x28] sm:$0xff]
    %v119 = vld [vmem:[%s2] sm:$0x3]
    %v121 = vlaneseq
    %v122 = vshrl.u32 %v121, 7
    %v123 = vsub.s32 0, %v122
    %v124 = vrot.slane %v119, %v123
    %v125 = vlaneseq
    %v126 = vshrl.u32 %v125, 7
    %v127 = vsub.s32 1, %v126
    %v128 = vrot.slane %v119, %v127
    %vm131 = vcmask 195584
    %v133 = vsel %vm131, %v111, 0
    %v136 = vsel %vm131, %v112, 0
    %138 = vmatprep.subr.mxu0 %v114
    %139 = vmatpush1.msra.mxu0 %v113
    %140 = vmatprep.subr.mxu0 %v116
    %141 = vmatpush1.msra.mxu0 %v115
    %142 = vmatprep.subr.mxu0 %v118
    %143 = vmatpush1.msra.mxu0 %v117
    %144 = vmatprep.subr.mxu0 0.0
    %145 = vmatpush1.msra.mxu0 0.0
    %146 = vmatprep.subr.mxu0 0.0
    %147 = vmatpush1.msra.mxu0 0.0
    %148 = vmatprep.subr.mxu0 0.0
    %149 = vmatpush1.msra.mxu0 0.0
    %150 = vmatprep.subr.mxu0 0.0
    %151 = vmatpush1.msra.mxu0 0.0
    %152 = vmatprep.subr.mxu0 0.0
    %153 = vmatpush1.msra.mxu0 0.0
    %154 = vmatprep.subr.mxu0 0.0
    %155 = vmatpush1.msra.mxu0 0.0
    %156 = vmatprep.subr.mxu0 0.0
    %157 = vmatpush1.msra.mxu0 0.0
    %158 = vmatprep.subr.mxu0 0.0
    %159 = vmatpush1.msra.mxu0 0.0
    %160 = vmatprep.subr.mxu0 0.0
    %161 = vmatpush1.msra.mxu0 0.0
    %162 = vmatprep.subr.mxu0 0.0
    %163 = vmatpush1.msra.mxu0 0.0
    %164 = vmatprep.subr.mxu0 0.0
    %165 = vmatpush1.msra.mxu0 0.0
    %166 = vmatprep.subr.mxu0 0.0
    %167 = vmatpush1.msra.mxu0 0.0
    %168 = vmatprep.subr.mxu0 0.0
    %169 = vmatpush1.msra.mxu0 0.0
    %170 = vmatprep.subr.mxu0 0.0
    %171 = vmatpush1.msra.mxu0 0.0
    %172 = vmatprep.subr.mxu0 0.0
    %173 = vmatpush1.msra.mxu0 0.0
    %174 = vmatprep.subr.mxu0 0.0
    %175 = vmatpush1.msra.mxu0 0.0
    %176 = vmatprep.subr.mxu0 0.0
    %177 = vmatpush1.msra.mxu0 0.0
    %178 = vmatprep.subr.mxu0 0.0
    %179 = vmatpush1.msra.mxu0 0.0
    %180 = vmatprep.subr.mxu0 0.0
    %181 = vmatpush1.msra.mxu0 0.0
    %182 = vmatprep.subr.mxu0 0.0
    %183 = vmatpush1.msra.mxu0 0.0
    %184 = vmatprep.subr.mxu0 0.0
    %185 = vmatpush1.msra.mxu0 0.0
    %186 = vmatprep.subr.mxu0 0.0
    %187 = vmatpush1.msra.mxu0 0.0
    %188 = vmatprep.subr.mxu0 0.0
    %189 = vmatpush1.msra.mxu0 0.0
    %190 = vmatprep.subr.mxu0 0.0
    %191 = vmatpush1.msra.mxu0 0.0
    %192 = vmatprep.subr.mxu0 0.0
    %193 = vmatpush1.msra.mxu0 0.0
    %194 = vmatprep.subr.mxu0 0.0
    %195 = vmatpush1.msra.mxu0 0.0
    %196 = vmatprep.subr.mxu0 0.0
    %197 = vmatpush1.msra.mxu0 0.0
    %198 = vmatprep.subr.mxu0 0.0
    %199 = vmatpush1.msra.mxu0 0.0
    %200 = vmatprep.subr.mxu0 0.0
    %201 = vmatpush1.msra.mxu0 0.0
    %202 = vmatprep.mubr.f32.mxu0 0.0
    %203 = vmatmul.mubr.f32.gmra.mrb[0].mxu0 %v133
    %v204 = vpop.f32.mrb[0].mxu0
    %v205 = vadd.f32 %v124, %v204
    %v206 = vpop.f32.mrb[0].mxu0
    %v207 = vadd.f32 %v128, %v206
    %208 = vmatprep.mubr.f32.mxu0 0.0
    %209 = vmatmul.mubr.f32.gmra.mrb[0].mxu0 %v136
    %v210 = vpop.f32.mrb[0].mxu0
    %v211 = vadd.f32 %v124, %v210
    %v212 = vpop.f32.mrb[0].mxu0
    %v213 = vadd.f32 %v128, %v212
    %214 = vdwg.mxu0
    %v215 = vmul.f32 %v205, 0.5
    %v216 = vmul.f32 %v207, 0.5
    %v217 = vmul.f32 %v211, 0.5
    %v218 = vmul.f32 %v213, 0.5
    %v219 = vtanh.pop %v215
    %v220 = vtanh.pop %v216
    %v221 = vtanh.pop %v217
    %v222 = vtanh.pop %v218
    %v223 = vmul.f32 %v219, 0.5
    %v224 = vmul.f32 %v220, 0.5
    %v225 = vmul.f32 %v221, 0.5
    %v226 = vmul.f32 %v222, 0.5
    %v227 = vadd.f32 %v223, 0.5
    %v228 = vadd.f32 %v224, 0.5
    %v229 = vadd.f32 %v225, 0.5
    %v230 = vadd.f32 %v226, 0.5
    %v231 = vmul.f32 %v205, %v227
    %v232 = vmul.f32 %v207, %v228
    %v233 = vmul.f32 %v211, %v229
    %v234 = vmul.f32 %v213, %v230
    %v235 = vld [vmem:[#allocation6] sm:$0xff]
    %v236 = vld [vmem:[#allocation6 + $0x8] sm:$0xff]
    %v237 = vld [vmem:[#allocation6 + $0x10] sm:$0xff]
    %v238 = vld [vmem:[#allocation6 + $0x18] sm:$0xff]
    %v239 = vld [vmem:[#allocation6 + $0x20] sm:$0xff]
    %v240 = vld [vmem:[#allocation6 + $0x28] sm:$0xff]
    %v241 = vld [vmem:[#allocation6 + $0x30] sm:$0xff]
    %v242 = vld [vmem:[#allocation6 + $0x38] sm:$0xff]
    %v243 = vld [vmem:[#allocation6 + $0x40] sm:$0xff]
    %v244 = vld [vmem:[#allocation6 + $0x48] sm:$0xff]
    %v245 = vld [vmem:[#allocation6 + $0x50] sm:$0xff]
    %v246 = vld [vmem:[#allocation6 + $0x58] sm:$0xff]
    %v247 = vld [vmem:[#allocation6 + $0x60] sm:$0xff]
    %v248 = vld [vmem:[#allocation6 + $0x68] sm:$0xff]
    %v249 = vld [vmem:[#allocation6 + $0x70] sm:$0xff]
    %v250 = vld [vmem:[#allocation6 + $0x78] sm:$0xff]
    %v251 = vld [vmem:[#allocation6 + $0x80] sm:$0xff]
    %v252 = vld [vmem:[#allocation6 + $0x88] sm:$0xff]
    %v253 = vld [vmem:[#allocation6 + $0x90] sm:$0xff]
    %v254 = vld [vmem:[#allocation6 + $0x98] sm:$0xff]
    %v255 = vld [vmem:[#allocation6 + $0xa0] sm:$0xff]
    %v256 = vld [vmem:[#allocation6 + $0xa8] sm:$0xff]
    %v257 = vld [vmem:[#allocation6 + $0xb0] sm:$0xff]
    %v258 = vld [vmem:[#allocation6 + $0xb8] sm:$0xff]
    %v259 = vld [vmem:[#allocation6 + $0xc0] sm:$0xff]
    %v260 = vld [vmem:[#allocation6 + $0xc8] sm:$0xff]
    %v261 = vld [vmem:[#allocation6 + $0xd0] sm:$0xff]
    %v262 = vld [vmem:[#allocation6 + $0xd8] sm:$0xff]
    %v263 = vld [vmem:[#allocation6 + $0xe0] sm:$0xff]
    %v264 = vld [vmem:[#allocation6 + $0xe8] sm:$0xff]
    %v265 = vld [vmem:[#allocation6 + $0xf0] sm:$0xff]
    %v266 = vld [vmem:[#allocation6 + $0xf8] sm:$0xff]
    %v267 = vld [vmem:[#allocation6 + $0x100] sm:$0xff]
    %v268 = vld [vmem:[#allocation6 + $0x108] sm:$0xff]
    %v269 = vld [vmem:[#allocation6 + $0x110] sm:$0xff]
    %v270 = vld [vmem:[#allocation6 + $0x118] sm:$0xff]
    %v271 = vld [vmem:[#allocation6 + $0x120] sm:$0xff]
    %v272 = vld [vmem:[#allocation6 + $0x128] sm:$0xff]
    %v273 = vld [vmem:[#allocation6 + $0x130] sm:$0xff]
    %v274 = vld [vmem:[#allocation6 + $0x138] sm:$0xff]
    %v275 = vld [vmem:[#allocation6 + $0x140] sm:$0xff]
    %v276 = vld [vmem:[#allocation6 + $0x148] sm:$0xff]
    %v277 = vld [vmem:[#allocation6 + $0x150] sm:$0xff]
    %v278 = vld [vmem:[#allocation6 + $0x158] sm:$0xff]
    %v279 = vld [vmem:[#allocation6 + $0x160] sm:$0xff]
    %v280 = vld [vmem:[#allocation6 + $0x168] sm:$0xff]
    %v281 = vld [vmem:[#allocation6 + $0x170] sm:$0xff]
    %v282 = vld [vmem:[#allocation6 + $0x178] sm:$0xff]
    %v283 = vld [vmem:[#allocation6 + $0x180] sm:$0xff]
    %v284 = vld [vmem:[#allocation6 + $0x188] sm:$0xff]
    %v285 = vld [vmem:[#allocation6 + $0x190] sm:$0xff]
    %v286 = vld [vmem:[#allocation6 + $0x198] sm:$0xff]
    %v287 = vld [vmem:[#allocation6 + $0x1a0] sm:$0xff]
    %v288 = vld [vmem:[#allocation6 + $0x1a8] sm:$0xff]
    %v289 = vld [vmem:[#allocation6 + $0x1b0] sm:$0xff]
    %v290 = vld [vmem:[#allocation6 + $0x1b8] sm:$0xff]
    %v291 = vld [vmem:[#allocation6 + $0x1c0] sm:$0xff]
    %v292 = vld [vmem:[#allocation6 + $0x1c8] sm:$0xff]
    %v293 = vld [vmem:[#allocation6 + $0x1d0] sm:$0xff]
    %v294 = vld [vmem:[#allocation6 + $0x1d8] sm:$0xff]
    %v295 = vld [vmem:[#allocation6 + $0x1e0] sm:$0xff]
    %v296 = vld [vmem:[#allocation6 + $0x1e8] sm:$0xff]
    %v297 = vld [vmem:[#allocation6 + $0x1f0] sm:$0xff]
    %v298 = vld [vmem:[#allocation6 + $0x1f8] sm:$0xff]
    %v299 = vld [vmem:[%s4] sm:$0x3]
    %v301 = vlaneseq
    %v302 = vshrl.u32 %v301, 7
    %v303 = vsub.s32 0, %v302
    %v304 = vrot.slane %v299, %v303
    %v305 = vlaneseq
    %v306 = vshrl.u32 %v305, 7
    %v307 = vsub.s32 1, %v306
    %v308 = vrot.slane %v299, %v307
    %311 = vmatprep.subr.mxu0 %v236
    %312 = vmatpush1.msra.mxu0 %v235
    %313 = vmatprep.subr.mxu0 %v238
    %314 = vmatpush1.msra.mxu0 %v237
    %315 = vmatprep.subr.mxu0 %v240
    %316 = vmatpush1.msra.mxu0 %v239
    %317 = vmatprep.subr.mxu0 %v242
    %318 = vmatpush1.msra.mxu0 %v241
    %319 = vmatprep.subr.mxu0 %v244
    %320 = vmatpush1.msra.mxu0 %v243
    %321 = vmatprep.subr.mxu0 %v246
    %322 = vmatpush1.msra.mxu0 %v245
    %323 = vmatprep.subr.mxu0 %v248
    %324 = vmatpush1.msra.mxu0 %v247
    %325 = vmatprep.subr.mxu0 %v250
    %326 = vmatpush1.msra.mxu0 %v249
    %327 = vmatprep.subr.mxu0 %v252
    %328 = vmatpush1.msra.mxu0 %v251
    %329 = vmatprep.subr.mxu0 %v254
    %330 = vmatpush1.msra.mxu0 %v253
    %331 = vmatprep.subr.mxu0 %v256
    %332 = vmatpush1.msra.mxu0 %v255
    %333 = vmatprep.subr.mxu0 %v258
    %334 = vmatpush1.msra.mxu0 %v257
    %335 = vmatprep.subr.mxu0 %v260
    %336 = vmatpush1.msra.mxu0 %v259
    %337 = vmatprep.subr.mxu0 %v262
    %338 = vmatpush1.msra.mxu0 %v261
    %339 = vmatprep.subr.mxu0 %v264
    %340 = vmatpush1.msra.mxu0 %v263
    %341 = vmatprep.subr.mxu0 %v266
    %342 = vmatpush1.msra.mxu0 %v265
    %343 = vmatprep.subr.mxu0 %v268
    %344 = vmatpush1.msra.mxu0 %v267
    %345 = vmatprep.subr.mxu0 %v270
    %346 = vmatpush1.msra.mxu0 %v269
    %347 = vmatprep.subr.mxu0 %v272
    %348 = vmatpush1.msra.mxu0 %v271
    %349 = vmatprep.subr.mxu0 %v274
    %350 = vmatpush1.msra.mxu0 %v273
    %351 = vmatprep.subr.mxu0 %v276
    %352 = vmatpush1.msra.mxu0 %v275
    %353 = vmatprep.subr.mxu0 %v278
    %354 = vmatpush1.msra.mxu0 %v277
    %355 = vmatprep.subr.mxu0 %v280
    %356 = vmatpush1.msra.mxu0 %v279
    %357 = vmatprep.subr.mxu0 %v282
    %358 = vmatpush1.msra.mxu0 %v281
    %359 = vmatprep.subr.mxu0 %v284
    %360 = vmatpush1.msra.mxu0 %v283
    %361 = vmatprep.subr.mxu0 %v286
    %362 = vmatpush1.msra.mxu0 %v285
    %363 = vmatprep.subr.mxu0 %v288
    %364 = vmatpush1.msra.mxu0 %v287
    %365 = vmatprep.subr.mxu0 %v290
    %366 = vmatpush1.msra.mxu0 %v289
    %367 = vmatprep.subr.mxu0 %v292
    %368 = vmatpush1.msra.mxu0 %v291
    %369 = vmatprep.subr.mxu0 %v294
    %370 = vmatpush1.msra.mxu0 %v293
    %371 = vmatprep.subr.mxu0 %v296
    %372 = vmatpush1.msra.mxu0 %v295
    %373 = vmatprep.subr.mxu0 %v298
    %374 = vmatpush1.msra.mxu0 %v297
    %375 = vmatprep.mubr.f32.mxu0 %v232
    %376 = vmatmul.mubr.f32.gmra.mrb[0].mxu0 %v231
    %v377 = vpop.f32.mrb[0].mxu0
    %v378 = vadd.f32 %v304, %v377
    %v379 = vpop.f32.mrb[0].mxu0
    %v380 = vadd.f32 %v308, %v379
    %381 = vmatprep.mubr.f32.mxu0 %v234
    %382 = vmatmul.mubr.f32.gmra.mrb[0].mxu0 %v233
    %v383 = vpop.f32.mrb[0].mxu0
    %v384 = vadd.f32 %v304, %v383
    %v385 = vpop.f32.mrb[0].mxu0
    %v386 = vadd.f32 %v308, %v385
    %387 = vdwg.mxu0
    %v388 = vmul.f32 %v378, 0.5
    %v389 = vmul.f32 %v380, 0.5
    %v390 = vmul.f32 %v384, 0.5
    %v391 = vmul.f32 %v386, 0.5
    %v392 = vtanh.pop %v388
    %v393 = vtanh.pop %v389
    %v394 = vtanh.pop %v390
    %v395 = vtanh.pop %v391
    %v396 = vmul.f32 %v392, 0.5
    %v397 = vmul.f32 %v393, 0.5
    %v398 = vmul.f32 %v394, 0.5
    %v399 = vmul.f32 %v395, 0.5
    %v400 = vadd.f32 %v396, 0.5
    %v401 = vadd.f32 %v397, 0.5
    %v402 = vadd.f32 %v398, 0.5
    %v403 = vadd.f32 %v399, 0.5
    %v404 = vmul.f32 %v378, %v400
    %v405 = vmul.f32 %v380, %v401
    %v406 = vmul.f32 %v384, %v402
    %v407 = vmul.f32 %v386, %v403
    %v408 = vld [vmem:[#allocation7] sm:$0xff]
    %v409 = vld [vmem:[#allocation7 + $0x8] sm:$0xff]
    %v410 = vld [vmem:[#allocation7 + $0x10] sm:$0xff]
    %v411 = vld [vmem:[#allocation7 + $0x18] sm:$0xff]
    %v412 = vld [vmem:[#allocation7 + $0x20] sm:$0xff]
    %v413 = vld [vmem:[#allocation7 + $0x28] sm:$0xff]
    %v414 = vld [vmem:[#allocation7 + $0x30] sm:$0xff]
    %v415 = vld [vmem:[#allocation7 + $0x38] sm:$0xff]
    %v416 = vld [vmem:[#allocation7 + $0x40] sm:$0xff]
    %v417 = vld [vmem:[#allocation7 + $0x48] sm:$0xff]
    %v418 = vld [vmem:[#allocation7 + $0x50] sm:$0xff]
    %v419 = vld [vmem:[#allocation7 + $0x58] sm:$0xff]
    %v420 = vld [vmem:[#allocation7 + $0x60] sm:$0xff]
    %v421 = vld [vmem:[#allocation7 + $0x68] sm:$0xff]
    %v422 = vld [vmem:[#allocation7 + $0x70] sm:$0xff]
    %v423 = vld [vmem:[#allocation7 + $0x78] sm:$0xff]
    %v424 = vld [vmem:[#allocation7 + $0x80] sm:$0xff]
    %v425 = vld [vmem:[#allocation7 + $0x88] sm:$0xff]
    %v426 = vld [vmem:[#allocation7 + $0x90] sm:$0xff]
    %v427 = vld [vmem:[#allocation7 + $0x98] sm:$0xff]
    %v428 = vld [vmem:[#allocation7 + $0xa0] sm:$0xff]
    %v429 = vld [vmem:[#allocation7 + $0xa8] sm:$0xff]
    %v430 = vld [vmem:[#allocation7 + $0xb0] sm:$0xff]
    %v431 = vld [vmem:[#allocation7 + $0xb8] sm:$0xff]
    %v432 = vld [vmem:[#allocation7 + $0xc0] sm:$0xff]
    %v433 = vld [vmem:[#allocation7 + $0xc8] sm:$0xff]
    %v434 = vld [vmem:[#allocation7 + $0xd0] sm:$0xff]
    %v435 = vld [vmem:[#allocation7 + $0xd8] sm:$0xff]
    %v436 = vld [vmem:[#allocation7 + $0xe0] sm:$0xff]
    %v437 = vld [vmem:[#allocation7 + $0xe8] sm:$0xff]
    %v438 = vld [vmem:[#allocation7 + $0xf0] sm:$0xff]
    %v439 = vld [vmem:[#allocation7 + $0xf8] sm:$0xff]
    %v440 = vld [vmem:[#allocation7 + $0x100] sm:$0xff]
    %v441 = vld [vmem:[#allocation7 + $0x108] sm:$0xff]
    %v442 = vld [vmem:[#allocation7 + $0x110] sm:$0xff]
    %v443 = vld [vmem:[#allocation7 + $0x118] sm:$0xff]
    %v444 = vld [vmem:[#allocation7 + $0x120] sm:$0xff]
    %v445 = vld [vmem:[#allocation7 + $0x128] sm:$0xff]
    %v446 = vld [vmem:[#allocation7 + $0x130] sm:$0xff]
    %v447 = vld [vmem:[#allocation7 + $0x138] sm:$0xff]
    %v448 = vld [vmem:[#allocation7 + $0x140] sm:$0xff]
    %v449 = vld [vmem:[#allocation7 + $0x148] sm:$0xff]
    %v450 = vld [vmem:[#allocation7 + $0x150] sm:$0xff]
    %v451 = vld [vmem:[#allocation7 + $0x158] sm:$0xff]
    %v452 = vld [vmem:[#allocation7 + $0x160] sm:$0xff]
    %v453 = vld [vmem:[#allocation7 + $0x168] sm:$0xff]
    %v454 = vld [vmem:[#allocation7 + $0x170] sm:$0xff]
    %v455 = vld [vmem:[#allocation7 + $0x178] sm:$0xff]
    %v456 = vld [vmem:[#allocation7 + $0x180] sm:$0xff]
    %v457 = vld [vmem:[#allocation7 + $0x188] sm:$0xff]
    %v458 = vld [vmem:[#allocation7 + $0x190] sm:$0xff]
    %v459 = vld [vmem:[#allocation7 + $0x198] sm:$0xff]
    %v460 = vld [vmem:[#allocation7 + $0x1a0] sm:$0xff]
    %v461 = vld [vmem:[#allocation7 + $0x1a8] sm:$0xff]
    %v462 = vld [vmem:[#allocation7 + $0x1b0] sm:$0xff]
    %v463 = vld [vmem:[#allocation7 + $0x1b8] sm:$0xff]
    %v464 = vld [vmem:[#allocation7 + $0x1c0] sm:$0xff]
    %v465 = vld [vmem:[#allocation7 + $0x1c8] sm:$0xff]
    %v466 = vld [vmem:[#allocation7 + $0x1d0] sm:$0xff]
    %v467 = vld [vmem:[#allocation7 + $0x1d8] sm:$0xff]
    %v468 = vld [vmem:[#allocation7 + $0x1e0] sm:$0xff]
    %v469 = vld [vmem:[#allocation7 + $0x1e8] sm:$0xff]
    %v470 = vld [vmem:[#allocation7 + $0x1f0] sm:$0xff]
    %v471 = vld [vmem:[#allocation7 + $0x1f8] sm:$0xff]
    %v472 = vld [vmem:[%s6] sm:$0x3]
    %v474 = vlaneseq
    %v475 = vshrl.u32 %v474, 7
    %v476 = vsub.s32 0, %v475
    %v477 = vrot.slane %v472, %v476
    %v478 = vlaneseq
    %v479 = vshrl.u32 %v478, 7
    %v480 = vsub.s32 1, %v479
    %v481 = vrot.slane %v472, %v480
    %484 = vmatprep.subr.mxu0 %v409
    %485 = vmatpush1.msra.mxu0 %v408
    %486 = vmatprep.subr.mxu0 %v411
    %487 = vmatpush1.msra.mxu0 %v410
    %488 = vmatprep.subr.mxu0 %v413
    %489 = vmatpush1.msra.mxu0 %v412
    %490 = vmatprep.subr.mxu0 %v415
    %491 = vmatpush1.msra.mxu0 %v414
    %492 = vmatprep.subr.mxu0 %v417
    %493 = vmatpush1.msra.mxu0 %v416
    %494 = vmatprep.subr.mxu0 %v419
    %495 = vmatpush1.msra.mxu0 %v418
    %496 = vmatprep.subr.mxu0 %v421
    %497 = vmatpush1.msra.mxu0 %v420
    %498 = vmatprep.subr.mxu0 %v423
    %499 = vmatpush1.msra.mxu0 %v422
    %500 = vmatprep.subr.mxu0 %v425
    %501 = vmatpush1.msra.mxu0 %v424
    %502 = vmatprep.subr.mxu0 %v427
    %503 = vmatpush1.msra.mxu0 %v426
    %504 = vmatprep.subr.mxu0 %v429
    %505 = vmatpush1.msra.mxu0 %v428
    %506 = vmatprep.subr.mxu0 %v431
    %507 = vmatpush1.msra.mxu0 %v430
    %508 = vmatprep.subr.mxu0 %v433
    %509 = vmatpush1.msra.mxu0 %v432
    %510 = vmatprep.subr.mxu0 %v435
    %511 = vmatpush1.msra.mxu0 %v434
    %512 = vmatprep.subr.mxu0 %v437
    %513 = vmatpush1.msra.mxu0 %v436
    %514 = vmatprep.subr.mxu0 %v439
    %515 = vmatpush1.msra.mxu0 %v438
    %516 = vmatprep.subr.mxu0 %v441
    %517 = vmatpush1.msra.mxu0 %v440
    %518 = vmatprep.subr.mxu0 %v443
    %519 = vmatpush1.msra.mxu0 %v442
    %520 = vmatprep.subr.mxu0 %v445
    %521 = vmatpush1.msra.mxu0 %v444
    %522 = vmatprep.subr.mxu0 %v447
    %523 = vmatpush1.msra.mxu0 %v446
    %524 = vmatprep.subr.mxu0 %v449
    %525 = vmatpush1.msra.mxu0 %v448
    %526 = vmatprep.subr.mxu0 %v451
    %527 = vmatpush1.msra.mxu0 %v450
    %528 = vmatprep.subr.mxu0 %v453
    %529 = vmatpush1.msra.mxu0 %v452
    %530 = vmatprep.subr.mxu0 %v455
    %531 = vmatpush1.msra.mxu0 %v454
    %532 = vmatprep.subr.mxu0 %v457
    %533 = vmatpush1.msra.mxu0 %v456
    %534 = vmatprep.subr.mxu0 %v459
    %535 = vmatpush1.msra.mxu0 %v458
    %536 = vmatprep.subr.mxu0 %v461
    %537 = vmatpush1.msra.mxu0 %v460
    %538 = vmatprep.subr.mxu0 %v463
    %539 = vmatpush1.msra.mxu0 %v462
    %540 = vmatprep.subr.mxu0 %v465
    %541 = vmatpush1.msra.mxu0 %v464
    %542 = vmatprep.subr.mxu0 %v467
    %543 = vmatpush1.msra.mxu0 %v466
    %544 = vmatprep.subr.mxu0 %v469
    %545 = vmatpush1.msra.mxu0 %v468
    %546 = vmatprep.subr.mxu0 %v471
    %547 = vmatpush1.msra.mxu0 %v470
    %548 = vmatprep.mubr.f32.mxu0 %v405
    %549 = vmatmul.mubr.f32.gmra.mrb[0].mxu0 %v404
    %v550 = vpop.f32.mrb[0].mxu0
    %v551 = vadd.f32 %v477, %v550
    %v552 = vpop.f32.mrb[0].mxu0
    %v553 = vadd.f32 %v481, %v552
    %554 = vmatprep.mubr.f32.mxu0 %v407
    %555 = vmatmul.mubr.f32.gmra.mrb[0].mxu0 %v406
    %v556 = vpop.f32.mrb[0].mxu0
    %v557 = vadd.f32 %v477, %v556
    %v558 = vpop.f32.mrb[0].mxu0
    %v559 = vadd.f32 %v481, %v558
    %560 = vdwg.mxu0
    %v561 = vmul.f32 %v551, 0.5
    %v562 = vmul.f32 %v553, 0.5
    %v563 = vmul.f32 %v557, 0.5
    %v564 = vmul.f32 %v559, 0.5
    %v565 = vtanh.pop %v561
    %v566 = vtanh.pop %v562
    %v567 = vtanh.pop %v563
    %v568 = vtanh.pop %v564
    %v569 = vmul.f32 %v565, 0.5
    %v570 = vmul.f32 %v566, 0.5
    %v571 = vmul.f32 %v567, 0.5
    %v572 = vmul.f32 %v568, 0.5
    %v573 = vadd.f32 %v569, 0.5
    %v574 = vadd.f32 %v570, 0.5
    %v575 = vadd.f32 %v571, 0.5
    %v576 = vadd.f32 %v572, 0.5
    %v577 = vmul.f32 %v551, %v573
    %v578 = vmul.f32 %v553, %v574
    %v579 = vmul.f32 %v557, %v575
    %v580 = vmul.f32 %v559, %v576
    %v581 = vld [vmem:[#allocation9] sm:$0xff]
    %v582 = vld [vmem:[#allocation9 + $0x8] sm:$0xff]
    %v583 = vld [vmem:[#allocation9 + $0x10] sm:$0xff]
    %v584 = vld [vmem:[#allocation9 + $0x18] sm:$0xff]
    %v585 = vld [vmem:[#allocation9 + $0x20] sm:$0xff]
    %v586 = vld [vmem:[#allocation9 + $0x28] sm:$0xff]
    %v587 = vld [vmem:[#allocation9 + $0x30] sm:$0xff]
    %v588 = vld [vmem:[#allocation9 + $0x38] sm:$0xff]
    %v589 = vld [vmem:[#allocation9 + $0x40] sm:$0xff]
    %v590 = vld [vmem:[#allocation9 + $0x48] sm:$0xff]
    %v591 = vld [vmem:[#allocation9 + $0x50] sm:$0xff]
    %v592 = vld [vmem:[#allocation9 + $0x58] sm:$0xff]
    %v593 = vld [vmem:[#allocation9 + $0x60] sm:$0xff]
    %v594 = vld [vmem:[#allocation9 + $0x68] sm:$0xff]
    %v595 = vld [vmem:[#allocation9 + $0x70] sm:$0xff]
    %v596 = vld [vmem:[#allocation9 + $0x78] sm:$0xff]
    %v597 = vld [vmem:[#allocation9 + $0x80] sm:$0xff]
    %v598 = vld [vmem:[#allocation9 + $0x88] sm:$0xff]
    %v599 = vld [vmem:[#allocation9 + $0x90] sm:$0xff]
    %v600 = vld [vmem:[#allocation9 + $0x98] sm:$0xff]
    %v601 = vld [vmem:[#allocation9 + $0xa0] sm:$0xff]
    %v602 = vld [vmem:[#allocation9 + $0xa8] sm:$0xff]
    %v603 = vld [vmem:[#allocation9 + $0xb0] sm:$0xff]
    %v604 = vld [vmem:[#allocation9 + $0xb8] sm:$0xff]
    %v605 = vld [vmem:[#allocation9 + $0xc0] sm:$0xff]
    %v606 = vld [vmem:[#allocation9 + $0xc8] sm:$0xff]
    %v607 = vld [vmem:[#allocation9 + $0xd0] sm:$0xff]
    %v608 = vld [vmem:[#allocation9 + $0xd8] sm:$0xff]
    %v609 = vld [vmem:[#allocation9 + $0xe0] sm:$0xff]
    %v610 = vld [vmem:[#allocation9 + $0xe8] sm:$0xff]
    %v611 = vld [vmem:[#allocation9 + $0xf0] sm:$0xff]
    %v612 = vld [vmem:[#allocation9 + $0xf8] sm:$0xff]
    %v613 = vld [vmem:[#allocation9 + $0x100] sm:$0xff]
    %v614 = vld [vmem:[#allocation9 + $0x108] sm:$0xff]
    %v615 = vld [vmem:[#allocation9 + $0x110] sm:$0xff]
    %v616 = vld [vmem:[#allocation9 + $0x118] sm:$0xff]
    %v617 = vld [vmem:[#allocation9 + $0x120] sm:$0xff]
    %v618 = vld [vmem:[#allocation9 + $0x128] sm:$0xff]
    %v619 = vld [vmem:[#allocation9 + $0x130] sm:$0xff]
    %v620 = vld [vmem:[#allocation9 + $0x138] sm:$0xff]
    %v621 = vld [vmem:[#allocation9 + $0x140] sm:$0xff]
    %v622 = vld [vmem:[#allocation9 + $0x148] sm:$0xff]
    %v623 = vld [vmem:[#allocation9 + $0x150] sm:$0xff]
    %v624 = vld [vmem:[#allocation9 + $0x158] sm:$0xff]
    %v625 = vld [vmem:[#allocation9 + $0x160] sm:$0xff]
    %v626 = vld [vmem:[#allocation9 + $0x168] sm:$0xff]
    %v627 = vld [vmem:[#allocation9 + $0x170] sm:$0xff]
    %v628 = vld [vmem:[#allocation9 + $0x178] sm:$0xff]
    %v629 = vld [vmem:[#allocation9 + $0x180] sm:$0xff]
    %v630 = vld [vmem:[#allocation9 + $0x188] sm:$0xff]
    %v631 = vld [vmem:[#allocation9 + $0x190] sm:$0xff]
    %v632 = vld [vmem:[#allocation9 + $0x198] sm:$0xff]
    %v633 = vld [vmem:[#allocation9 + $0x1a0] sm:$0xff]
    %v634 = vld [vmem:[#allocation9 + $0x1a8] sm:$0xff]
    %v635 = vld [vmem:[#allocation9 + $0x1b0] sm:$0xff]
    %v636 = vld [vmem:[#allocation9 + $0x1b8] sm:$0xff]
    %v637 = vld [vmem:[#allocation9 + $0x1c0] sm:$0xff]
    %v638 = vld [vmem:[#allocation9 + $0x1c8] sm:$0xff]
    %v639 = vld [vmem:[#allocation9 + $0x1d0] sm:$0xff]
    %v640 = vld [vmem:[#allocation9 + $0x1d8] sm:$0xff]
    %v641 = vld [vmem:[#allocation9 + $0x1e0] sm:$0xff]
    %v642 = vld [vmem:[#allocation9 + $0x1e8] sm:$0xff]
    %v643 = vld [vmem:[#allocation9 + $0x1f0] sm:$0xff]
    %v644 = vld [vmem:[#allocation9 + $0x1f8] sm:$0xff]
    %v645 = vld [vmem:[%s8] sm:$0x3]
    %v647 = vlaneseq
    %v648 = vshrl.u32 %v647, 7
    %v649 = vsub.s32 0, %v648
    %v650 = vrot.slane %v645, %v649
    %v651 = vlaneseq
    %v652 = vshrl.u32 %v651, 7
    %v653 = vsub.s32 1, %v652
    %v654 = vrot.slane %v645, %v653
    %657 = vmatprep.subr.mxu0 %v582
    %658 = vmatpush1.msra.mxu0 %v581
    %659 = vmatprep.subr.mxu0 %v584
    %660 = vmatpush1.msra.mxu0 %v583
    %661 = vmatprep.subr.mxu0 %v586
    %662 = vmatpush1.msra.mxu0 %v585
    %663 = vmatprep.subr.mxu0 %v588
    %664 = vmatpush1.msra.mxu0 %v587
    %665 = vmatprep.subr.mxu0 %v590
    %666 = vmatpush1.msra.mxu0 %v589
    %667 = vmatprep.subr.mxu0 %v592
    %668 = vmatpush1.msra.mxu0 %v591
    %669 = vmatprep.subr.mxu0 %v594
    %670 = vmatpush1.msra.mxu0 %v593
    %671 = vmatprep.subr.mxu0 %v596
    %672 = vmatpush1.msra.mxu0 %v595
    %673 = vmatprep.subr.mxu0 %v598
    %674 = vmatpush1.msra.mxu0 %v597
    %675 = vmatprep.subr.mxu0 %v600
    %676 = vmatpush1.msra.mxu0 %v599
    %677 = vmatprep.subr.mxu0 %v602
    %678 = vmatpush1.msra.mxu0 %v601
    %679 = vmatprep.subr.mxu0 %v604
    %680 = vmatpush1.msra.mxu0 %v603
    %681 = vmatprep.subr.mxu0 %v606
    %682 = vmatpush1.msra.mxu0 %v605
    %683 = vmatprep.subr.mxu0 %v608
    %684 = vmatpush1.msra.mxu0 %v607
    %685 = vmatprep.subr.mxu0 %v610
    %686 = vmatpush1.msra.mxu0 %v609
    %687 = vmatprep.subr.mxu0 %v612
    %688 = vmatpush1.msra.mxu0 %v611
    %689 = vmatprep.subr.mxu0 %v614
    %690 = vmatpush1.msra.mxu0 %v613
    %691 = vmatprep.subr.mxu0 %v616
    %692 = vmatpush1.msra.mxu0 %v615
    %693 = vmatprep.subr.mxu0 %v618
    %694 = vmatpush1.msra.mxu0 %v617
    %695 = vmatprep.subr.mxu0 %v620
    %696 = vmatpush1.msra.mxu0 %v619
    %697 = vmatprep.subr.mxu0 %v622
    %698 = vmatpush1.msra.mxu0 %v621
    %699 = vmatprep.subr.mxu0 %v624
    %700 = vmatpush1.msra.mxu0 %v623
    %701 = vmatprep.subr.mxu0 %v626
    %702 = vmatpush1.msra.mxu0 %v625
    %703 = vmatprep.subr.mxu0 %v628
    %704 = vmatpush1.msra.mxu0 %v627
    %705 = vmatprep.subr.mxu0 %v630
    %706 = vmatpush1.msra.mxu0 %v629
    %707 = vmatprep.subr.mxu0 %v632
    %708 = vmatpush1.msra.mxu0 %v631
    %709 = vmatprep.subr.mxu0 %v634
    %710 = vmatpush1.msra.mxu0 %v633
    %711 = vmatprep.subr.mxu0 %v636
    %712 = vmatpush1.msra.mxu0 %v635
    %713 = vmatprep.subr.mxu0 %v638
    %714 = vmatpush1.msra.mxu0 %v637
    %715 = vmatprep.subr.mxu0 %v640
    %716 = vmatpush1.msra.mxu0 %v639
    %717 = vmatprep.subr.mxu0 %v642
    %718 = vmatpush1.msra.mxu0 %v641
    %719 = vmatprep.subr.mxu0 %v644
    %720 = vmatpush1.msra.mxu0 %v643
    %721 = vmatprep.mubr.f32.mxu0 %v578
    %722 = vmatmul.mubr.f32.gmra.mrb[0].mxu0 %v577
    %v723 = vpop.f32.mrb[0].mxu0
    %v724 = vadd.f32 %v650, %v723
    %v725 = vpop.f32.mrb[0].mxu0
    %v726 = vadd.f32 %v654, %v725
    %727 = vmatprep.mubr.f32.mxu0 %v580
    %728 = vmatmul.mubr.f32.gmra.mrb[0].mxu0 %v579
    %v729 = vpop.f32.mrb[0].mxu0
    %v730 = vadd.f32 %v650, %v729
    %v731 = vpop.f32.mrb[0].mxu0
    %v732 = vadd.f32 %v654, %v731
    %733 = vdwg.mxu0
    %v734 = vld [vmem:[%s9] sm:$0x1]
    %v736 = vlaneseq
    %v737 = vshrl.u32 %v736, 7
    %v738 = vsub.s32 0, %v737
    %v739 = vrot.slane %v734, %v738
    %v741 = vsub.f32 %v726, %v739
    %v742 = vsub.f32 %v732, %v739
    %v743 = vmul.f32 %v741, 0.5
    %v744 = vmul.f32 %v742, 0.5
    %v745 = vtanh.pop %v743
    %v746 = vtanh.pop %v744
    %v747 = vmul.f32 %v745, 0.5
    %v748 = vmul.f32 %v746, 0.5
    %v749 = vadd.f32 %v747, 0.5
    %v750 = vadd.f32 %v748, 0.5
    %751 = vst [vmem:[%s12] sm:$0xff] %v724
    %752 = vst [vmem:[%s12 + $0x8] sm:$0xff] %v730
    %v753 = vld [vmem:[%s10] sm:$0x1]
    %v754 = vld [vmem:[%s11] sm:$0x1]
    %v756 = vlaneseq
    %v757 = vshrl.u32 %v756, 7
    %v758 = vsub.s32 0, %v757
    %v759 = vrot.slane %v754, %v758
    %v761 = vmul.f32 %v759, %v749
    %v762 = vmul.f32 %v759, %v750
    %v764 = vlaneseq
    %v765 = vshrl.u32 %v764, 7
    %v766 = vsub.s32 0, %v765
    %v767 = vrot.slane %v753, %v766
    %v769 = vadd.f32 %v767, %v761
    %v770 = vadd.f32 %v767, %v762
    %771 = vst [vmem:[%s13] sm:$0xff] %v769
    %772 = vst [vmem:[%s13 + $0x8] sm:$0xff] %v770
    // Predicated region
    $region70: #{ptmodel_forward.1} parent=1 // pred_check
      _
    $region71: #{ptmodel_forward.1} parent=1 // pred_check_branch
      %774 = sbr.rel (0) target = $region73
    $region72: #{ptmodel_forward.1} parent=1 // pred_region
      _
    $region73: #{ptmodel_forward.1} parent=1 // pred_fallthru
      _
    // Predicated region
    $region74: #{ptmodel_forward.1} parent=1 // pred_check
      _
    $region75: #{ptmodel_forward.1} parent=1 // pred_check_branch
      %776 = sbr.rel (0) target = $region77
    $region76: #{ptmodel_forward.1} parent=1 // pred_region
      _
    $region77: #{ptmodel_forward.1} parent=1 // pred_fallthru
      _
    // Predicated region
    $region78: #{ptmodel_forward.1} parent=1 // pred_check
      _
    $region79: #{ptmodel_forward.1} parent=1 // pred_check_branch
      %778 = sbr.rel (0) target = $region81
    $region80: #{ptmodel_forward.1} parent=1 // pred_region
      _
    $region81: #{ptmodel_forward.1} parent=1 // pred_fallthru
      _
    // Predicated region
    $region82: #{ptmodel_forward.1} parent=1 // pred_check
      _
    $region83: #{ptmodel_forward.1} parent=1 // pred_check_branch
      %780 = sbr.rel (0) target = $region85
    $region84: #{ptmodel_forward.1} parent=1 // pred_region
      _
    $region85: #{ptmodel_forward.1} parent=1 // pred_fallthru
      _
    %781 = vsyncpa [#allocation3], 1
    %782 = vsyncpa [#allocation5], 1
    %783 = vsyncpa [#allocation8], 1

</llo_original>
